<compile_context>
chip_gen: v7x
topology: tpu7x:2x2x1
jax: 0.10.0
libtpu: 0.0.40
codegen_flags: <defaults>
</compile_context>

<pallas_src>
import jax
import jax.numpy as jnp
from jax.experimental import pallas as pl
from jax.experimental.pallas import tpu as pltpu


def _round_up(x, m):
    return ((x + m - 1) // m) * m


def _vmem_capacity_bytes():
    try:
        return int(pltpu.get_tpu_info().vmem_capacity_bytes)
    except Exception:
        return 64 << 20  # conservative: v7x per-TensorCore VMEM


def _largest_tile(dfp, tf_max):
    """Largest multiple-of-128 divisor of dfp that is <= tf_max (>=128)."""
    q = dfp // 128
    best = 1
    for d in range(1, q + 1):
        if q % d == 0 and 128 * d <= tf_max:
            best = d
    return 128 * best


def _select_tiles(M, dmp, dfp, xbytes, wbytes, obytes, vmem_cap, tm_req, tf_req):
    """Pick (tm, tf) so double-buffered blocks + f32 intermediates fit VMEM."""
    budget = int(vmem_cap) - (6 << 20)                 # headroom for Mosaic
    big_vmem = vmem_cap >= (96 << 20)                  # 128-MiB parts (v5e/v6e)
    tm = tm_req if tm_req is not None else (1024 if big_vmem else 512)
    tm = max(16, min(_round_up(tm, 16), _round_up(M, 16)))
    if tf_req is not None:
        return tm, _largest_tile(dfp, max(128, min(_round_up(tf_req, 128), dfp)))
    while True:
        fixed = (2 * tm * dmp * xbytes                 # x blocks (double-buffered)
                 + 2 * tm * dmp * obytes               # out blocks
                 + tm * dmp * 4                        # f32 accumulator
                 + tm * dmp * 4                        # f32 partial product temp
                 + 8 * (dfp + dmp)                     # biases
                 + (1 << 20))                          # misc
        avail = budget - fixed
        # Weight-resident fast path: both padded weight matrices + the f32
        # hidden tile live in VMEM; constant block index => fetched once.
        if 4 * dmp * dfp * wbytes + 4 * tm * dfp <= avail:
            return tm, dfp
        per_tf = 4 * dmp * wbytes + 4 * tm             # W1+W2 col bufs + f32 h col
        tf = _largest_tile(dfp, max(128, (max(0, avail) // per_tf) // 128 * 128))
        if tf >= min(256, dfp):
            return tm, tf
        if tm <= 128 or tm_req is not None:
            return tm, tf
        tm = max(128, _round_up(tm // 2, 16))


def _make_ffn_kernel(compute_dtype, activation, accumulate_in_output):
    """Build the fused FFN kernel. Grid = (row_tiles, d_ff_tiles)."""

    def body(x_ref, w1_ref, b1_ref, w2_ref, b2_ref, o_ref, acc_ref):
        j = pl.program_id(1)
        x = x_ref[...].astype(compute_dtype)
        h = jnp.dot(x, w1_ref[...], preferred_element_type=jnp.float32) + b1_ref[...]
        if activation == "gelu":
            h = jax.nn.gelu(h, approximate=True)
        else:
            h = jnp.maximum(h, 0.0)                    # ReLU (module default)
        # dropout is identity in eval mode.
        # TODO(synk): training-mode dropout would use pltpu.prng_seed/prng_random_bits.
        part = jnp.dot(h.astype(w2_ref.dtype), w2_ref[...],
                       preferred_element_type=jnp.float32)

        @pl.when(j == 0)
        def _():
            acc_ref[...] = part

        @pl.when(j > 0)
        def _():
            acc_ref[...] = acc_ref[...] + part

        @pl.when(j == pl.num_programs(1) - 1)
        def _():
            if accumulate_in_output:                   # acc_ref IS o_ref (f32)
                o_ref[...] = o_ref[...] + b2_ref[...]
            else:
                o_ref[...] = (acc_ref[...] + b2_ref[...]).astype(o_ref.dtype)

    if accumulate_in_output:
        def kernel(x_ref, w1_ref, b1_ref, w2_ref, b2_ref, o_ref):
            body(x_ref, w1_ref, b1_ref, w2_ref, b2_ref, o_ref, o_ref)
    else:
        def kernel(x_ref, w1_ref, b1_ref, w2_ref, b2_ref, o_ref, acc_ref):
            body(x_ref, w1_ref, b1_ref, w2_ref, b2_ref, o_ref, acc_ref)
    return kernel


def feed_forward_network(x, w1, b1, w2, b2, *, tm=None, tf=None,
                         compute_dtype=jnp.bfloat16, activation="relu"):
    """x: (batch, seq, d_model). w1: (d_model, d_ff), w2: (d_ff, d_model)."""
    B, S, d_model = x.shape
    d_ff = w1.shape[1]
    out_dtype = x.dtype
    M = B * S

    # Lane-dense layout: feature dims padded to multiples of 128.
    dmp = _round_up(d_model, 128)
    dfp = _round_up(d_ff, 128)

    cbytes = jnp.dtype(compute_dtype).itemsize
    obytes = jnp.dtype(out_dtype).itemsize
    x_needs_lane_pad = dmp != d_model
    xbytes = cbytes if x_needs_lane_pad else jnp.dtype(x.dtype).itemsize

    vmem_cap = _vmem_capacity_bytes()
    tm_eff, tf_eff = _select_tiles(M, dmp, dfp, xbytes, cbytes, obytes,
                                   vmem_cap, tm, tf)
    M_pad = _round_up(M, tm_eff)

    # x: fed through unmodified (cast inside kernel) when already aligned;
    # otherwise one cast+pad pass.
    x2d = x.reshape(M, d_model)
    if x_needs_lane_pad or M_pad != M:
        x2d = jnp.pad(x2d.astype(compute_dtype),
                      ((0, M_pad - M), (0, dmp - d_model)))

    # Weights: cast/pad once per call.
    # TODO(synk): in a real model keep weights pre-cast/pre-padded in
    # compute_dtype so this pre-pass disappears from the per-call path.
    w1p = w1 if w1.dtype == compute_dtype else w1.astype(compute_dtype)
    w2p = w2 if w2.dtype == compute_dtype else w2.astype(compute_dtype)
    if dmp != d_model or dfp != d_ff:
        w1p = jnp.pad(w1p, ((0, dmp - d_model), (0, dfp - d_ff)))
        w2p = jnp.pad(w2p, ((0, dfp - d_ff), (0, dmp - d_model)))
    b1p = jnp.pad(b1.astype(jnp.float32), (0, dfp - d_ff)).reshape(1, dfp)
    b2p = jnp.pad(b2.astype(jnp.float32), (0, dmp - d_model)).reshape(1, dmp)

    n_row = M_pad // tm_eff
    n_j = dfp // tf_eff
    grid = (n_row, n_j)

    acc_in_out = jnp.dtype(out_dtype) == jnp.dtype(jnp.float32)
    kernel = _make_ffn_kernel(compute_dtype, activation, acc_in_out)
    scratch = [] if acc_in_out else [pltpu.VMEM((tm_eff, dmp), jnp.float32)]

    # VMEM actually requested from the compiler (capped at physical capacity).
    w_bufs = 4 * dmp * tf_eff * cbytes                  # 2 bufs x (W1+W2) blocks
    usage = (2 * tm_eff * dmp * x2d.dtype.itemsize      # x blocks
             + 2 * tm_eff * dmp * obytes                # out blocks
             + (0 if acc_in_out else tm_eff * dmp * 4)  # scratch accumulator
             + tm_eff * tf_eff * 4                      # f32 hidden tile
             + tm_eff * dmp * 4                         # f32 partial product
             + w_bufs + 8 * (dfp + dmp))
    vmem_limit = int(max(16 << 20, min(vmem_cap, usage + (8 << 20))))

    weight_passes = 1 if n_j == 1 else n_row            # re-streamed per row tile
    cost = pl.CostEstimate(
        flops=4 * M_pad * dmp * dfp,
        transcendentals=0,
        bytes_accessed=int(x2d.size * x2d.dtype.itemsize
                           + weight_passes * (w1p.size + w2p.size) * cbytes
                           + (b1p.size + b2p.size) * 4
                           + M_pad * dmp * obytes))

    out2d = pl.pallas_call(
        kernel,
        out_shape=jax.ShapeDtypeStruct((M_pad, dmp), out_dtype),
        grid_spec=pltpu.PrefetchScalarGridSpec(
            num_scalar_prefetch=0,
            grid=grid,
            in_specs=[
                pl.BlockSpec((tm_eff, dmp), lambda i, j: (i, 0)),   # x rows
                pl.BlockSpec((dmp, tf_eff), lambda i, j: (0, j)),   # W1 chunk
                pl.BlockSpec((1, tf_eff), lambda i, j: (0, j)),     # b1 chunk
                pl.BlockSpec((tf_eff, dmp), lambda i, j: (j, 0)),   # W2 chunk
                pl.BlockSpec((1, dmp), lambda i, j: (0, 0)),        # b2
            ],
            out_specs=pl.BlockSpec((tm_eff, dmp), lambda i, j: (i, 0)),
            scratch_shapes=scratch,
        ),
        compiler_params=pltpu.CompilerParams(
            dimension_semantics=("parallel", "arbitrary"),
            vmem_limit_bytes=vmem_limit),
        cost_estimate=cost,
    )(x2d, w1p, b1p, w2p, b2p)

    out = out2d
    if M_pad != M or dmp != d_model:
        out = out[:M, :d_model]
    return out.reshape(B, S, d_model)


def _reference(x, w1, b1, w2, b2, activation="relu"):
    h = jnp.einsum("bsd,df->bsf", x.astype(jnp.float32),
                   w1.astype(jnp.float32)) + b1
    if activation == "gelu":
        h = jax.nn.gelu(h, approximate=True)
    else:
        h = jnp.maximum(h, 0.0)
    return jnp.einsum("bsf,fd->bsd", h, w2.astype(jnp.float32)) + b2


if __name__ == "__main__":
    key = jax.random.PRNGKey(0)
    kx, kw1, kb1, kw2, kb2, kx2, kw3, kb3, kw4, kb4 = jax.random.split(key, 10)

    # Case A: small FFN where d_model needs lane padding.
    d_model, d_ff = 32, 256
    batch, seq = 2, 8
    x = jax.random.normal(kx, (batch, seq, d_model), dtype=jnp.float32)
    bound1 = 1.0 / (d_model ** 0.5)
    w1 = jax.random.uniform(kw1, (d_model, d_ff), minval=-bound1, maxval=bound1,
                            dtype=jnp.float32)
    b1 = jax.random.uniform(kb1, (d_ff,), minval=-bound1, maxval=bound1,
                            dtype=jnp.float32)
    bound2 = 1.0 / (d_ff ** 0.5)
    w2 = jax.random.uniform(kw2, (d_ff, d_model), minval=-bound2, maxval=bound2,
                            dtype=jnp.float32)
    b2 = jax.random.uniform(kb2, (d_model,), minval=-bound2, maxval=bound2,
                            dtype=jnp.float32)

    ref = _reference(x, w1, b1, w2, b2)

    # (1) f32 compute, weight-resident single-step path: exact.
    out = jax.block_until_ready(
        feed_forward_network(x, w1, b1, w2, b2, compute_dtype=jnp.float32))
    assert out.shape == (batch, seq, d_model)
    assert jnp.allclose(out, ref, atol=1e-4, rtol=1e-4)

    # (2) bf16 compute (default performance path).
    out = jax.block_until_ready(feed_forward_network(x, w1, b1, w2, b2))
    assert jnp.allclose(out, ref, atol=5e-2, rtol=5e-2)

    # (3) f32 compute, forced d_ff streaming (2 reduction steps):
    #     exercises the accumulate-into-output (no-scratch) kernel variant.
    out = jax.block_until_ready(
        feed_forward_network(x, w1, b1, w2, b2, compute_dtype=jnp.float32,
                             tf=128))
    assert jnp.allclose(out, ref, atol=1e-4, rtol=1e-4)

    # (4) bf16 input/output + forced streaming: exercises the f32 scratch
    #     accumulator kernel variant.
    xb = x.astype(jnp.bfloat16)
    out = jax.block_until_ready(feed_forward_network(xb, w1, b1, w2, b2, tf=128))
    assert out.dtype == jnp.bfloat16
    assert jnp.allclose(out.astype(jnp.float32), ref, atol=1e-1, rtol=1e-1)

    # (5) lane-aligned d_model (x fed through without pre-pass) + GELU.
    d_model2, d_ff2 = 128, 256
    x2 = jax.random.normal(kx2, (batch, seq, d_model2), dtype=jnp.float32)
    bnd1 = 1.0 / (d_model2 ** 0.5)
    w3 = jax.random.uniform(kw3, (d_model2, d_ff2), minval=-bnd1, maxval=bnd1,
                            dtype=jnp.float32)
    b3 = jax.random.uniform(kb3, (d_ff2,), minval=-bnd1, maxval=bnd1,
                            dtype=jnp.float32)
    bnd2 = 1.0 / (d_ff2 ** 0.5)
    w4 = jax.random.uniform(kw4, (d_ff2, d_model2), minval=-bnd2, maxval=bnd2,
                            dtype=jnp.float32)
    b4 = jax.random.uniform(kb4, (d_model2,), minval=-bnd2, maxval=bnd2,
                            dtype=jnp.float32)
    ref2 = _reference(x2, w3, b3, w4, b4, activation="gelu")
    out2 = jax.block_until_ready(
        feed_forward_network(x2, w3, b3, w4, b4, compute_dtype=jnp.float32,
                             activation="gelu"))
    assert jnp.allclose(out2, ref2, atol=1e-4, rtol=1e-4)

    print("KERNEL_OK")
</pallas_src>

<mosaic_0001>
module attributes {stable_mosaic.version = 11 : i64} {
  func.func @kernel(%arg0: i32, %arg1: i32, %arg2: memref<16x128xf32, #tpu.memory_space<vmem>>, %arg3: memref<128x256xf32, #tpu.memory_space<vmem>>, %arg4: memref<1x256xf32, #tpu.memory_space<vmem>>, %arg5: memref<256x128xf32, #tpu.memory_space<vmem>>, %arg6: memref<1x128xf32, #tpu.memory_space<vmem>>, %arg7: memref<16x128xf32, #tpu.memory_space<vmem>>) attributes {dimension_semantics = [#tpu.dimension_semantics<parallel>, #tpu.dimension_semantics<arbitrary>], iteration_bounds = array<i64: 1, 1>, scalar_prefetch = 0 : i64, scratch_operands = 0 : i64, tpu.core_type = #tpu.core_type<tc>, window_params = [{transform_indices = @transform_0, window_bounds = array<i64: 16, 128>}, {transform_indices = @transform_1, window_bounds = array<i64: 128, 256>}, {transform_indices = @transform_2, window_bounds = array<i64: 1, 256>}, {transform_indices = @transform_3, window_bounds = array<i64: 256, 128>}, {pipeline_mode = #tpu.pipeline_mode<synchronous>, transform_indices = @transform_4, window_bounds = array<i64: 1, 128>}, {transform_indices = @transform_5, window_bounds = array<i64: 16, 128>}]} {
    %c0 = arith.constant 0 : index
    %c0_0 = arith.constant 0 : index
    %0 = vector.load %arg2[%c0, %c0_0] : memref<16x128xf32, #tpu.memory_space<vmem>>, vector<16x128xf32>
    %c0_1 = arith.constant 0 : index
    %c0_2 = arith.constant 0 : index
    %1 = vector.load %arg3[%c0_1, %c0_2] : memref<128x256xf32, #tpu.memory_space<vmem>>, vector<128x256xf32>
    %cst = arith.constant dense<0.000000e+00> : vector<16x256xf32>
    %2 = tpu.matmul %0, %1, %cst {dimension_numbers = #tpu.dot_dimension_numbers<[1], [0], [0], [1], [0, 0, 1, 1], [], []>} : vector<16x128xf32>, vector<128x256xf32>, vector<16x256xf32> -> vector<16x256xf32>
    %c0_3 = arith.constant 0 : index
    %c0_4 = arith.constant 0 : index
    %3 = vector.load %arg4[%c0_3, %c0_4] : memref<1x256xf32, #tpu.memory_space<vmem>>, vector<1x256xf32>
    %4 = vector.broadcast %3 : vector<1x256xf32> to vector<16x256xf32>
    %5 = arith.addf %2, %4 : vector<16x256xf32>
    %cst_5 = arith.constant 0.000000e+00 : f32
    %6 = vector.broadcast %cst_5 : f32 to vector<16x256xf32>
    %7 = arith.maximumf %5, %6 : vector<16x256xf32>
    %c0_6 = arith.constant 0 : index
    %c0_7 = arith.constant 0 : index
    %8 = vector.load %arg5[%c0_6, %c0_7] : memref<256x128xf32, #tpu.memory_space<vmem>>, vector<256x128xf32>
    %cst_8 = arith.constant dense<0.000000e+00> : vector<16x128xf32>
    %9 = tpu.matmul %7, %8, %cst_8 {dimension_numbers = #tpu.dot_dimension_numbers<[1], [0], [0], [1], [0, 0, 1, 1], [], []>} : vector<16x256xf32>, vector<256x128xf32>, vector<16x128xf32> -> vector<16x128xf32>
    %c0_i32 = arith.constant 0 : i32
    %10 = arith.cmpi eq, %arg1, %c0_i32 : i32
    %11 = arith.extui %10 : i1 to i32
    %c0_i32_9 = arith.constant 0 : i32
    %12 = arith.cmpi ne, %11, %c0_i32_9 : i32
    scf.if %12 {
      %c0_14 = arith.constant 0 : index
      %c0_15 = arith.constant 0 : index
      %19 = vector.load %arg7[%c0_14, %c0_15] : memref<16x128xf32, #tpu.memory_space<vmem>>, vector<16x128xf32>
      tpu.vector_store %arg7[%c0_14, %c0_15], %9 {strides = array<i32>} : memref<16x128xf32, #tpu.memory_space<vmem>>, vector<16x128xf32>,
    } else {
    }
    %c0_i32_10 = arith.constant 0 : i32
    %13 = arith.cmpi sgt, %arg1, %c0_i32_10 : i32
    %14 = arith.extui %13 : i1 to i32
    %c0_i32_11 = arith.constant 0 : i32
    %15 = arith.cmpi ne, %14, %c0_i32_11 : i32
    scf.if %15 {
      %c0_14 = arith.constant 0 : index
      %c0_15 = arith.constant 0 : index
      %19 = vector.load %arg7[%c0_14, %c0_15] : memref<16x128xf32, #tpu.memory_space<vmem>>, vector<16x128xf32>
      %20 = arith.addf %19, %9 : vector<16x128xf32>
      %c0_16 = arith.constant 0 : index
      %c0_17 = arith.constant 0 : index
      %21 = vector.load %arg7[%c0_16, %c0_17] : memref<16x128xf32, #tpu.memory_space<vmem>>, vector<16x128xf32>
      tpu.vector_store %arg7[%c0_16, %c0_17], %20 {strides = array<i32>} : memref<16x128xf32, #tpu.memory_space<vmem>>, vector<16x128xf32>,
    } else {
    }
    %c0_i32_12 = arith.constant 0 : i32
    %16 = arith.cmpi eq, %arg1, %c0_i32_12 : i32
    %17 = arith.extui %16 : i1 to i32
    %c0_i32_13 = arith.constant 0 : i32
    %18 = arith.cmpi ne, %17, %c0_i32_13 : i32
    scf.if %18 {
      %c0_14 = arith.constant 0 : index
      %c0_15 = arith.constant 0 : index
      %19 = vector.load %arg7[%c0_14, %c0_15] : memref<16x128xf32, #tpu.memory_space<vmem>>, vector<16x128xf32>
      %c0_16 = arith.constant 0 : index
      %c0_17 = arith.constant 0 : index
      %20 = vector.load %arg6[%c0_16, %c0_17] : memref<1x128xf32, #tpu.memory_space<vmem>>, vector<1x128xf32>
      %21 = vector.broadcast %20 : vector<1x128xf32> to vector<16x128xf32>
      %22 = arith.addf %19, %21 : vector<16x128xf32>
      %c0_18 = arith.constant 0 : index
      %c0_19 = arith.constant 0 : index
      %23 = vector.load %arg7[%c0_18, %c0_19] : memref<16x128xf32, #tpu.memory_space<vmem>>, vector<16x128xf32>
      tpu.vector_store %arg7[%c0_18, %c0_19], %22 {strides = array<i32>} : memref<16x128xf32, #tpu.memory_space<vmem>>, vector<16x128xf32>,
    } else {
    }
    return
  }
  func.func @transform_0(%arg0: i32, %arg1: i32) -> (i32, i32) {
    %c0_i32 = arith.constant 0 : i32
    %c0_i32_0 = arith.constant 0 : i32
    return %arg0, %c0_i32 : i32, i32
  }
  func.func @transform_1(%arg0: i32, %arg1: i32) -> (i32, i32) {
    %c0_i32 = arith.constant 0 : i32
    %c0_i32_0 = arith.constant 0 : i32
    return %c0_i32, %arg1 : i32, i32
  }
  func.func @transform_2(%arg0: i32, %arg1: i32) -> (i32, i32) {
    %c0_i32 = arith.constant 0 : i32
    %c0_i32_0 = arith.constant 0 : i32
    return %c0_i32, %arg1 : i32, i32
  }
  func.func @transform_3(%arg0: i32, %arg1: i32) -> (i32, i32) {
    %c0_i32 = arith.constant 0 : i32
    %c0_i32_0 = arith.constant 0 : i32
    return %arg1, %c0_i32 : i32, i32
  }
  func.func @transform_4(%arg0: i32, %arg1: i32) -> (i32, i32) {
    %c0_i32 = arith.constant 0 : i32
    %c0_i32_0 = arith.constant 0 : i32
    %c0_i32_1 = arith.constant 0 : i32
    return %c0_i32, %c0_i32_0 : i32, i32
  }
  func.func @transform_5(%arg0: i32, %arg1: i32) -> (i32, i32) {
    %c0_i32 = arith.constant 0 : i32
    %c0_i32_0 = arith.constant 0 : i32
    return %arg0, %c0_i32 : i32, i32
  }
}

</mosaic_0001>

<llo_original>
// kernel: tpu_custom_call.1
$region0: #{tpu_custom_call.1}
  #allocation0 [shape = 'u32[]', space=smem, size = 0x4, offset = 0x4, fixed_abs, tag = 'smem constant byte address 0x4 - core index']
  #allocation1 [shape = 'u32[144,128]{1,0:T(1,128)}', space=vmem, size = 0x12000, scoped, tag = 'internal scratch']
  %s0 = inlined_call_operand.hbm [shape: f32[16,128], index: 0, kind: input, shape index: {}]
  %s1 = inlined_call_operand.hbm [shape: f32[128,256], index: 1, kind: input, shape index: {}]
  %s2 = inlined_call_operand.vmem [shape: f32[1,256], index: 2, kind: input, shape index: {}]
  %s3 = inlined_call_operand.hbm [shape: f32[256,128], index: 3, kind: input, shape index: {}]
  %s4 = inlined_call_operand.vmem [shape: f32[1,128], index: 4, kind: input, shape index: {}]
  %s5 = inlined_call_operand.hbm [shape: f32[16,128], index: 5, kind: output, shape index: {}]
  %s6 = sld [smem:[#allocation0]]
  $region54: #{tpu_custom_call.1} parent=0
    _
  %s8 = ssub.s32 1, %s6
  %s9 = scalar_select 0, %s8, %s6
  $region1: #{tpu_custom_call.1} parent=0
    #allocation2 [shape = 'u8[8192]{0}', space=vmem, size = 0x2000, scoped, tag = 'input window, operand 0, single buffered']
    #allocation3 [shape = 's32[1]{0}', space=sflag, size = 0x4, scoped, tag = 'scoped memory for tpu_custom_call.1']
    #allocation4 [shape = 's32[1]{0}', space=sflag, size = 0x4, scoped, tag = 'scoped memory for tpu_custom_call.1']
    #allocation5 [shape = 'u8[131072]{0}', space=vmem, size = 0x20000, scoped, tag = 'input window, operand 1, single buffered']
    #allocation6 [shape = 's32[1]{0}', space=sflag, size = 0x4, scoped, tag = 'scoped memory for tpu_custom_call.1']
    #allocation7 [shape = 'u8[131072]{0}', space=vmem, size = 0x20000, scoped, tag = 'input window, operand 3, single buffered']
    #allocation8 [shape = 'u8[8192]{0}', space=vmem, size = 0x2000, scoped, tag = 'output window, operand 0, single buffered']
    %10 = vsyncpa [#allocation3], 0
    %11 = vsyncpa [#allocation6], 0
    %12 = vsyncpa [#allocation4], 0
    // Predicated region
    $region2: #{tpu_custom_call.1} parent=1 // pred_check
      _
    $region3: #{tpu_custom_call.1} parent=1 // pred_check_branch
      %14 = sbr.rel (0) target = $region5
    $region4: #{tpu_custom_call.1} parent=1 // pred_region
      %s16 = ssub.s32 256, 256
      %17 = vsyncadd [#allocation3], %s16
      %s18 = sshll.u32 [#allocation2], 4
      %s19 = int_to_ptr.vmem [resolvable:$true] %s18
      %24 = dma.hbm_to_vmem [thread:$0]  %s0, 256, %s19, [#allocation3], 128, 128, 8
    $region5: #{tpu_custom_call.1} parent=1 // pred_fallthru
      _
    // Predicated region
    $region6: #{tpu_custom_call.1} parent=1 // pred_check
      _
    $region7: #{tpu_custom_call.1} parent=1 // pred_check_branch
      %26 = sbr.rel (0) target = $region9
    $region8: #{tpu_custom_call.1} parent=1 // pred_region
      %s28 = ssub.s32 4096, 4096
      %29 = vsyncadd [#allocation6], %s28
      %s30 = sshll.u32 [#allocation5], 4
      %s31 = int_to_ptr.vmem [resolvable:$true] %s30
      %36 = dma.hbm_to_vmem [thread:$0]  %s1, 4096, %s31, [#allocation6], 256, 256, 16
    $region9: #{tpu_custom_call.1} parent=1 // pred_fallthru
      _
    // Predicated region
    $region10: #{tpu_custom_call.1} parent=1 // pred_check
      _
    $region11: #{tpu_custom_call.1} parent=1 // pred_check_branch
      %38 = sbr.rel (0) target = $region13
    $region12: #{tpu_custom_call.1} parent=1 // pred_region
      _
    $region13: #{tpu_custom_call.1} parent=1 // pred_fallthru
      _
    // Predicated region
    $region14: #{tpu_custom_call.1} parent=1 // pred_check
      _
    $region15: #{tpu_custom_call.1} parent=1 // pred_check_branch
      %40 = sbr.rel (0) target = $region17
    $region16: #{tpu_custom_call.1} parent=1 // pred_region
      %s42 = ssub.s32 4096, 4096
      %43 = vsyncadd [#allocation6], %s42
      %s44 = sshll.u32 [#allocation7], 4
      %s45 = int_to_ptr.vmem [resolvable:$true] %s44
      %50 = dma.hbm_to_vmem [thread:$0]  %s3, 4096, %s45, [#allocation6], 128, 128, 8
    $region17: #{tpu_custom_call.1} parent=1 // pred_fallthru
      _
    // Predicated region
    $region18: #{tpu_custom_call.1} parent=1 // pred_check
      _
    $region19: #{tpu_custom_call.1} parent=1 // pred_check_branch
      %52 = sbr.rel (0) target = $region21
    $region20: #{tpu_custom_call.1} parent=1 // pred_region
      _
    $region21: #{tpu_custom_call.1} parent=1 // pred_fallthru
      _
    // Predicated region
    $region22: #{tpu_custom_call.1} parent=1 // pred_check
      _
    $region23: #{tpu_custom_call.1} parent=1 // pred_check_branch
      %54 = sbr.rel (0) target = $region25
    $region24: #{tpu_custom_call.1} parent=1 // pred_region
      %55 = dma.done [#allocation3], 256
    $region25: #{tpu_custom_call.1} parent=1 // pred_fallthru
      _
    // Predicated region
    $region26: #{tpu_custom_call.1} parent=1 // pred_check
      _
    $region27: #{tpu_custom_call.1} parent=1 // pred_check_branch
      %57 = sbr.rel (0) target = $region29
    $region28: #{tpu_custom_call.1} parent=1 // pred_region
      %58 = dma.done [#allocation6], 4096
    $region29: #{tpu_custom_call.1} parent=1 // pred_fallthru
      _
    // Predicated region
    $region30: #{tpu_custom_call.1} parent=1 // pred_check
      _
    $region31: #{tpu_custom_call.1} parent=1 // pred_check_branch
      %60 = sbr.rel (0) target = $region33
    $region32: #{tpu_custom_call.1} parent=1 // pred_region
      %61 = dma.done [#allocation6], 4096
    $region33: #{tpu_custom_call.1} parent=1 // pred_fallthru
      _
    %v62 = vld [vmem:[#allocation2] sm:$0xff]
    %v63 = vld [vmem:[#allocation2 + $0x8] sm:$0xff]
    %v64 = vld [vmem:[#allocation5] sm:$0xff]
    %v65 = vld [vmem:[#allocation5 + $0x8] sm:$0xff]
    %v66 = vld [vmem:[#allocation5 + $0x10] sm:$0xff]
    %v67 = vld [vmem:[#allocation5 + $0x18] sm:$0xff]
    %v68 = vld [vmem:[#allocation5 + $0x20] sm:$0xff]
    %v69 = vld [vmem:[#allocation5 + $0x28] sm:$0xff]
    %v70 = vld [vmem:[#allocation5 + $0x30] sm:$0xff]
    %v71 = vld [vmem:[#allocation5 + $0x38] sm:$0xff]
    %v72 = vld [vmem:[#allocation5 + $0x40] sm:$0xff]
    %v73 = vld [vmem:[#allocation5 + $0x48] sm:$0xff]
    %v74 = vld [vmem:[#allocation5 + $0x50] sm:$0xff]
    %v75 = vld [vmem:[#allocation5 + $0x58] sm:$0xff]
    %v76 = vld [vmem:[#allocation5 + $0x60] sm:$0xff]
    %v77 = vld [vmem:[#allocation5 + $0x68] sm:$0xff]
    %v78 = vld [vmem:[#allocation5 + $0x70] sm:$0xff]
    %v79 = vld [vmem:[#allocation5 + $0x78] sm:$0xff]
    %v80 = vld [vmem:[#allocation5 + $0x80] sm:$0xff]
    %v81 = vld [vmem:[#allocation5 + $0x88] sm:$0xff]
    %v82 = vld [vmem:[#allocation5 + $0x90] sm:$0xff]
    %v83 = vld [vmem:[#allocation5 + $0x98] sm:$0xff]
    %v84 = vld [vmem:[#allocation5 + $0xa0] sm:$0xff]
    %v85 = vld [vmem:[#allocation5 + $0xa8] sm:$0xff]
    %v86 = vld [vmem:[#allocation5 + $0xb0] sm:$0xff]
    %v87 = vld [vmem:[#allocation5 + $0xb8] sm:$0xff]
    %v88 = vld [vmem:[#allocation5 + $0xc0] sm:$0xff]
    %v89 = vld [vmem:[#allocation5 + $0xc8] sm:$0xff]
    %v90 = vld [vmem:[#allocation5 + $0xd0] sm:$0xff]
    %v91 = vld [vmem:[#allocation5 + $0xd8] sm:$0xff]
    %v92 = vld [vmem:[#allocation5 + $0xe0] sm:$0xff]
    %v93 = vld [vmem:[#allocation5 + $0xe8] sm:$0xff]
    %v94 = vld [vmem:[#allocation5 + $0xf0] sm:$0xff]
    %v95 = vld [vmem:[#allocation5 + $0xf8] sm:$0xff]
    %v96 = vld [vmem:[%s2] sm:$0x3]
    %v98 = vlaneseq
    %v99 = vshrl.u32 %v98, 7
    %v100 = vsub.s32 0, %v99
    %v101 = vrot.slane %v96, %v100
    %v102 = vlaneseq
    %v103 = vshrl.u32 %v102, 7
    %v104 = vsub.s32 1, %v103
    %v105 = vrot.slane %v96, %v104
    %108 = vmatprep.subr.mxu0 %v65
    %109 = vmatpush1.msra.mxu0 %v64
    %110 = vmatprep.subr.mxu0 %v67
    %111 = vmatpush1.msra.mxu0 %v66
    %112 = vmatprep.subr.mxu0 %v69
    %113 = vmatpush1.msra.mxu0 %v68
    %114 = vmatprep.subr.mxu0 %v71
    %115 = vmatpush1.msra.mxu0 %v70
    %116 = vmatprep.subr.mxu0 %v73
    %117 = vmatpush1.msra.mxu0 %v72
    %118 = vmatprep.subr.mxu0 %v75
    %119 = vmatpush1.msra.mxu0 %v74
    %120 = vmatprep.subr.mxu0 %v77
    %121 = vmatpush1.msra.mxu0 %v76
    %122 = vmatprep.subr.mxu0 %v79
    %123 = vmatpush1.msra.mxu0 %v78
    %124 = vmatprep.subr.mxu0 %v81
    %125 = vmatpush1.msra.mxu0 %v80
    %126 = vmatprep.subr.mxu0 %v83
    %127 = vmatpush1.msra.mxu0 %v82
    %128 = vmatprep.subr.mxu0 %v85
    %129 = vmatpush1.msra.mxu0 %v84
    %130 = vmatprep.subr.mxu0 %v87
    %131 = vmatpush1.msra.mxu0 %v86
    %132 = vmatprep.subr.mxu0 %v89
    %133 = vmatpush1.msra.mxu0 %v88
    %134 = vmatprep.subr.mxu0 %v91
    %135 = vmatpush1.msra.mxu0 %v90
    %136 = vmatprep.subr.mxu0 %v93
    %137 = vmatpush1.msra.mxu0 %v92
    %138 = vmatprep.subr.mxu0 %v95
    %139 = vmatpush1.msra.mxu0 %v94
    %140 = vmatprep.subr.mxu0 0.0
    %141 = vmatpush1.msra.mxu0 0.0
    %142 = vmatprep.subr.mxu0 0.0
    %143 = vmatpush1.msra.mxu0 0.0
    %144 = vmatprep.subr.mxu0 0.0
    %145 = vmatpush1.msra.mxu0 0.0
    %146 = vmatprep.subr.mxu0 0.0
    %147 = vmatpush1.msra.mxu0 0.0
    %148 = vmatprep.subr.mxu0 0.0
    %149 = vmatpush1.msra.mxu0 0.0
    %150 = vmatprep.subr.mxu0 0.0
    %151 = vmatpush1.msra.mxu0 0.0
    %152 = vmatprep.subr.mxu0 0.0
    %153 = vmatpush1.msra.mxu0 0.0
    %154 = vmatprep.subr.mxu0 0.0
    %155 = vmatpush1.msra.mxu0 0.0
    %156 = vmatprep.subr.mxu0 0.0
    %157 = vmatpush1.msra.mxu0 0.0
    %158 = vmatprep.subr.mxu0 0.0
    %159 = vmatpush1.msra.mxu0 0.0
    %160 = vmatprep.subr.mxu0 0.0
    %161 = vmatpush1.msra.mxu0 0.0
    %162 = vmatprep.subr.mxu0 0.0
    %163 = vmatpush1.msra.mxu0 0.0
    %164 = vmatprep.subr.mxu0 0.0
    %165 = vmatpush1.msra.mxu0 0.0
    %166 = vmatprep.subr.mxu0 0.0
    %167 = vmatpush1.msra.mxu0 0.0
    %168 = vmatprep.subr.mxu0 0.0
    %169 = vmatpush1.msra.mxu0 0.0
    %170 = vmatprep.subr.mxu0 0.0
    %171 = vmatpush1.msra.mxu0 0.0
    %172 = vmatprep.mubr.f32.mxu0 0.0
    %173 = vmatmul.mubr.f32.gmra.mrb[0].mxu0 %v62
    %v174 = vpop.f32.mrb[0].mxu0
    %v175 = vadd.f32 %v101, %v174
    %v176 = vpop.f32.mrb[0].mxu0
    %v177 = vadd.f32 %v105, %v176
    %178 = vmatprep.mubr.f32.mxu0 0.0
    %179 = vmatmul.mubr.f32.gmra.mrb[0].mxu0 %v63
    %v180 = vpop.f32.mrb[0].mxu0
    %v181 = vadd.f32 %v101, %v180
    %v182 = vpop.f32.mrb[0].mxu0
    %v183 = vadd.f32 %v105, %v182
    %184 = vdwg.mxu0
    %v185 = vmax.f32 %v175, 0.0
    %v186 = vmax.f32 %v177, 0.0
    %v187 = vmax.f32 %v181, 0.0
    %v188 = vmax.f32 %v183, 0.0
    %v189 = vld [vmem:[#allocation7] sm:$0xff]
    %v190 = vld [vmem:[#allocation7 + $0x8] sm:$0xff]
    %v191 = vld [vmem:[#allocation7 + $0x10] sm:$0xff]
    %v192 = vld [vmem:[#allocation7 + $0x18] sm:$0xff]
    %v193 = vld [vmem:[#allocation7 + $0x20] sm:$0xff]
    %v194 = vld [vmem:[#allocation7 + $0x28] sm:$0xff]
    %v195 = vld [vmem:[#allocation7 + $0x30] sm:$0xff]
    %v196 = vld [vmem:[#allocation7 + $0x38] sm:$0xff]
    %v197 = vld [vmem:[#allocation7 + $0x40] sm:$0xff]
    %v198 = vld [vmem:[#allocation7 + $0x48] sm:$0xff]
    %v199 = vld [vmem:[#allocation7 + $0x50] sm:$0xff]
    %v200 = vld [vmem:[#allocation7 + $0x58] sm:$0xff]
    %v201 = vld [vmem:[#allocation7 + $0x60] sm:$0xff]
    %v202 = vld [vmem:[#allocation7 + $0x68] sm:$0xff]
    %v203 = vld [vmem:[#allocation7 + $0x70] sm:$0xff]
    %v204 = vld [vmem:[#allocation7 + $0x78] sm:$0xff]
    %v205 = vld [vmem:[#allocation7 + $0x80] sm:$0xff]
    %v206 = vld [vmem:[#allocation7 + $0x88] sm:$0xff]
    %v207 = vld [vmem:[#allocation7 + $0x90] sm:$0xff]
    %v208 = vld [vmem:[#allocation7 + $0x98] sm:$0xff]
    %v209 = vld [vmem:[#allocation7 + $0xa0] sm:$0xff]
    %v210 = vld [vmem:[#allocation7 + $0xa8] sm:$0xff]
    %v211 = vld [vmem:[#allocation7 + $0xb0] sm:$0xff]
    %v212 = vld [vmem:[#allocation7 + $0xb8] sm:$0xff]
    %v213 = vld [vmem:[#allocation7 + $0xc0] sm:$0xff]
    %v214 = vld [vmem:[#allocation7 + $0xc8] sm:$0xff]
    %v215 = vld [vmem:[#allocation7 + $0xd0] sm:$0xff]
    %v216 = vld [vmem:[#allocation7 + $0xd8] sm:$0xff]
    %v217 = vld [vmem:[#allocation7 + $0xe0] sm:$0xff]
    %v218 = vld [vmem:[#allocation7 + $0xe8] sm:$0xff]
    %v219 = vld [vmem:[#allocation7 + $0xf0] sm:$0xff]
    %v220 = vld [vmem:[#allocation7 + $0xf8] sm:$0xff]
    %221 = vmatprep.subr.mxu0 0.0
    %222 = vmatpush1.msra.mxu0 %v189
    %223 = vmatprep.subr.mxu0 0.0
    %224 = vmatpush1.msra.mxu0 %v190
    %225 = vmatprep.subr.mxu0 0.0
    %226 = vmatpush1.msra.mxu0 %v191
    %227 = vmatprep.subr.mxu0 0.0
    %228 = vmatpush1.msra.mxu0 %v192
    %229 = vmatprep.subr.mxu0 0.0
    %230 = vmatpush1.msra.mxu0 %v193
    %231 = vmatprep.subr.mxu0 0.0
    %232 = vmatpush1.msra.mxu0 %v194
    %233 = vmatprep.subr.mxu0 0.0
    %234 = vmatpush1.msra.mxu0 %v195
    %235 = vmatprep.subr.mxu0 0.0
    %236 = vmatpush1.msra.mxu0 %v196
    %237 = vmatprep.subr.mxu0 0.0
    %238 = vmatpush1.msra.mxu0 %v197
    %239 = vmatprep.subr.mxu0 0.0
    %240 = vmatpush1.msra.mxu0 %v198
    %241 = vmatprep.subr.mxu0 0.0
    %242 = vmatpush1.msra.mxu0 %v199
    %243 = vmatprep.subr.mxu0 0.0
    %244 = vmatpush1.msra.mxu0 %v200
    %245 = vmatprep.subr.mxu0 0.0
    %246 = vmatpush1.msra.mxu0 %v201
    %247 = vmatprep.subr.mxu0 0.0
    %248 = vmatpush1.msra.mxu0 %v202
    %249 = vmatprep.subr.mxu0 0.0
    %250 = vmatpush1.msra.mxu0 %v203
    %251 = vmatprep.subr.mxu0 0.0
    %252 = vmatpush1.msra.mxu0 %v204
    %253 = vmatprep.subr.mxu0 0.0
    %254 = vmatpush1.msra.mxu0 %v205
    %255 = vmatprep.subr.mxu0 0.0
    %256 = vmatpush1.msra.mxu0 %v206
    %257 = vmatprep.subr.mxu0 0.0
    %258 = vmatpush1.msra.mxu0 %v207
    %259 = vmatprep.subr.mxu0 0.0
    %260 = vmatpush1.msra.mxu0 %v208
    %261 = vmatprep.subr.mxu0 0.0
    %262 = vmatpush1.msra.mxu0 %v209
    %263 = vmatprep.subr.mxu0 0.0
    %264 = vmatpush1.msra.mxu0 %v210
    %265 = vmatprep.subr.mxu0 0.0
    %266 = vmatpush1.msra.mxu0 %v211
    %267 = vmatprep.subr.mxu0 0.0
    %268 = vmatpush1.msra.mxu0 %v212
    %269 = vmatprep.subr.mxu0 0.0
    %270 = vmatpush1.msra.mxu0 %v213
    %271 = vmatprep.subr.mxu0 0.0
    %272 = vmatpush1.msra.mxu0 %v214
    %273 = vmatprep.subr.mxu0 0.0
    %274 = vmatpush1.msra.mxu0 %v215
    %275 = vmatprep.subr.mxu0 0.0
    %276 = vmatpush1.msra.mxu0 %v216
    %277 = vmatprep.subr.mxu0 0.0
    %278 = vmatpush1.msra.mxu0 %v217
    %279 = vmatprep.subr.mxu0 0.0
    %280 = vmatpush1.msra.mxu0 %v218
    %281 = vmatprep.subr.mxu0 0.0
    %282 = vmatpush1.msra.mxu0 %v219
    %283 = vmatprep.subr.mxu0 0.0
    %284 = vmatpush1.msra.mxu0 %v220
    %285 = vmatprep.mubr.f32.mxu0 %v186
    %286 = vmatmul.mubr.f32.gmra.mrb[0].mxu0 %v185
    %v287 = vpop.f32.mrb[0].mxu0
    %v288 = vadd.f32 0.0, %v287
    %v289 = vpop.f32.mrb[0].mxu0
    %290 = vmatprep.mubr.f32.mxu0 %v188
    %291 = vmatmul.mubr.f32.gmra.mrb[0].mxu0 %v187
    %v292 = vpop.f32.mrb[0].mxu0
    %v293 = vadd.f32 0.0, %v292
    %v294 = vpop.f32.mrb[0].mxu0
    %295 = vdwg.mxu0
    %p296 = scmp.eq.s32.totalorder 0, 0
    // Predicated region
    $region34: #{tpu_custom_call.1} parent=1 // pred_check
      %p297 = pneg %p296
    $region35: #{tpu_custom_call.1} parent=1 // pred_check_branch
      %299 = sbr.rel (%p297) target = $region37
    $region36: #{tpu_custom_call.1} parent=1 // pred_region
      %300 = vst [vmem:[#allocation8] sm:$0xff] %v288
      %301 = vst [vmem:[#allocation8 + $0x8] sm:$0xff] %v293
    $region37: #{tpu_custom_call.1} parent=1 // pred_fallthru
      _
    %p302 = scmp.gt.s32.totalorder 0, 0
    // Predicated region
    $region38: #{tpu_custom_call.1} parent=1 // pred_check
      %p303 = pneg %p302
    $region39: #{tpu_custom_call.1} parent=1 // pred_check_branch
      %305 = sbr.rel (%p303) target = $region41
    $region40: #{tpu_custom_call.1} parent=1 // pred_region
      %v306 = vld [vmem:[#allocation8] sm:$0xff]
      %v307 = vld [vmem:[#allocation8 + $0x8] sm:$0xff]
      %v308 = vadd.f32 %v306, %v288
      %v309 = vadd.f32 %v307, %v293
      %310 = vst [vmem:[#allocation8] sm:$0xff] %v308
      %311 = vst [vmem:[#allocation8 + $0x8] sm:$0xff] %v309
    $region41: #{tpu_custom_call.1} parent=1 // pred_fallthru
      _
    // Predicated region
    $region42: #{tpu_custom_call.1} parent=1 // pred_check
      %p312 = pneg %p296
    $region43: #{tpu_custom_call.1} parent=1 // pred_check_branch
      %314 = sbr.rel (%p312) target = $region45
    $region44: #{tpu_custom_call.1} parent=1 // pred_region
      %v315 = vld [vmem:[#allocation8] sm:$0xff]
      %v316 = vld [vmem:[#allocation8 + $0x8] sm:$0xff]
      %v317 = vld [vmem:[%s4] sm:$0x1]
      %v319 = vlaneseq
      %v320 = vshrl.u32 %v319, 7
      %v321 = vsub.s32 0, %v320
      %v322 = vrot.slane %v317, %v321
      %v324 = vadd.f32 %v315, %v322
      %v325 = vadd.f32 %v316, %v322
      %326 = vst [vmem:[#allocation8] sm:$0xff] %v324
      %327 = vst [vmem:[#allocation8 + $0x8] sm:$0xff] %v325
    $region45: #{tpu_custom_call.1} parent=1 // pred_fallthru
      _
    // Predicated region
    $region46: #{tpu_custom_call.1} parent=1 // pred_check
      _
    $region47: #{tpu_custom_call.1} parent=1 // pred_check_branch
      %329 = sbr.rel (0) target = $region49
    $region48: #{tpu_custom_call.1} parent=1 // pred_region
      %s331 = ssub.s32 256, 256
      %332 = vsyncadd [#allocation4], %s331
      %s333 = sshll.u32 [#allocation8], 4
      %s334 = int_to_ptr.vmem [resolvable:$true] %s333
      %339 = dma.vmem_to_hbm [thread:$0]  %s334, 256, %s5, [#allocation4], 128, 128, 8
    $region49: #{tpu_custom_call.1} parent=1 // pred_fallthru
      _
    // Predicated region
    $region50: #{tpu_custom_call.1} parent=1 // pred_check
      _
    $region51: #{tpu_custom_call.1} parent=1 // pred_check_branch
      %341 = sbr.rel (0) target = $region53
    $region52: #{tpu_custom_call.1} parent=1 // pred_region
      %342 = dma.done [#allocation4], 256
    $region53: #{tpu_custom_call.1} parent=1 // pred_fallthru
      _
    %343 = vsyncpa [#allocation3], 1
    %344 = vsyncpa [#allocation6], 1
    %345 = vsyncpa [#allocation4], 1

</llo_original>
